<compile_context>
chip_gen: v7x
topology: tpu7x:2x2x1
jax: 0.10.0
libtpu: 0.0.40
codegen_flags: <defaults>
</compile_context>

<pallas_src>
import math

import jax
import jax.numpy as jnp
from jax.experimental import pallas as pl
from jax.experimental.pallas import tpu as pltpu


def _build_pe_table(d_model: int, max_len: int) -> jnp.ndarray:
    """Deterministic sinusoidal table, identical to the PyTorch __init__ buffer."""
    position = jnp.arange(max_len, dtype=jnp.float32)[:, None]          # [max_len, 1]
    div_term = jnp.exp(
        jnp.arange(0, d_model, 2, dtype=jnp.float32)
        * (-math.log(10000.0) / d_model)
    )                                                                   # [d_model/2]
    angles = position * div_term                                        # [max_len, d_model/2]
    pe = jnp.zeros((max_len, d_model), dtype=jnp.float32)
    pe = pe.at[:, 0::2].set(jnp.sin(angles))
    pe = pe.at[:, 1::2].set(jnp.cos(angles))
    return pe                                                           # [max_len, d_model]


def prepare_pe(pe_table: jnp.ndarray, seq_len: int, x_dtype) -> jnp.ndarray:
    """Module-init-style preprocessing, off the per-call critical path.

    Applies PyTorch type promotion (e.g. bf16 x + f32 pe -> f32 result) and
    returns the lane-dense [1, S*D] slab the kernel consumes directly.
    """
    out_dtype = jnp.promote_types(x_dtype, pe_table.dtype)
    d_model = pe_table.shape[1]
    return pe_table[:seq_len, :].astype(out_dtype).reshape(1, seq_len * d_model)


def _pe_add_kernel(x_ref, pe_ref, o_ref):
    # x_ref: (TB, TL) tile; pe_ref: (1, TL) tile broadcast over the TB rows.
    o_ref[...] = x_ref[...] + pe_ref[...]


def _sublane_rows(itemsize: int) -> int:
    # VMEM blocks pad their second-to-last dim to the dtype's sublane tile.
    return {4: 8, 2: 16, 1: 32}.get(itemsize, 8)


def _round_up(a: int, m: int) -> int:
    return -(-a // m) * m


def _is_v7() -> bool:
    try:
        return "v7" in jax.devices()[0].device_kind.lower()
    except Exception:
        return False


def _choose_tiles(B: int, L: int, itemsize: int, is_v7: bool):
    """Pick (TB, TL) with padded-VMEM accounting (x in/out double-buffered plus
    the sublane-padded, double-buffered pe block) so we never exceed the limit."""
    sub = _sublane_rows(itemsize)
    TB = B if B <= sub else sub                     # full dim (legal) or sublane multiple
    padded_TB = _round_up(TB, sub)                  # what the block really occupies in VMEM

    # Bigger tiles on v7x (3.2 TB/s HBM) to amortize ~0.35 us per-grid-step overhead.
    x_tile_target = (8 if is_v7 else 4) * 1024 * 1024
    vmem_budget = 32 * 1024 * 1024                  # total padded usage, << 48 MiB limit

    cap_from_target = x_tile_target // (padded_TB * itemsize)
    # Per lane-element bytes: double-buffered x-in + x-out (padded_TB rows each)
    # plus the double-buffered pe block padded to `sub` rows.
    per_lane_elem_bytes = 2 * (2 * padded_TB + sub) * itemsize
    cap_from_vmem = vmem_budget // per_lane_elem_bytes
    tl_cap = max(128, (min(cap_from_target, cap_from_vmem) // 128) * 128)

    # v7x: guarantee >= 2 grid steps on the ("parallel") L axis when the batch
    # axis collapses to a single tile, so both TensorCores get work.
    if is_v7 and pl.cdiv(B, TB) == 1 and L >= 256:
        tl_cap = min(tl_cap, max(128, ((L // 2) // 128) * 128))

    if L <= tl_cap:
        TL = L                                      # full dim (legal even if < 128)
    else:
        TL = tl_cap
        # Prefer a 128-multiple that evenly divides L: avoids a masked epilogue tile.
        for cand in range(tl_cap, 127, -128):
            if L % cand == 0:
                TL = cand
                break
    return TB, TL


def positional_encoding_forward(x: jnp.ndarray, pe2d: jnp.ndarray) -> jnp.ndarray:
    """x: [B, S, D]; pe2d: [1, S*D] from prepare_pe. Returns x + pe[:S] (eval dropout)."""
    B, S, D = x.shape
    L = S * D
    out_dtype = pe2d.dtype                          # promotion already applied at prep time
    itemsize = jnp.dtype(out_dtype).itemsize

    x2d = x.reshape(B, L)                           # bitcast under jit
    aliases = {}
    if x2d.dtype == out_dtype:
        aliases = {0: 0}                            # in-place add over (donated) x
    else:
        x2d = x2d.astype(out_dtype)                 # PyTorch-style promotion path

    is_v7 = _is_v7()
    TB, TL = _choose_tiles(B, L, itemsize, is_v7)
    grid = (pl.cdiv(L, TL), pl.cdiv(B, TB))         # batch innermost: pe stays resident

    out2d = pl.pallas_call(
        _pe_add_kernel,
        out_shape=jax.ShapeDtypeStruct((B, L), out_dtype),
        grid=grid,
        in_specs=[
            pl.BlockSpec((TB, TL), lambda l, b: (b, l)),
            pl.BlockSpec((1, TL), lambda l, b: (0, l)),   # constant over inner b axis
        ],
        out_specs=pl.BlockSpec((TB, TL), lambda l, b: (b, l)),
        input_output_aliases=aliases,
        compiler_params=pltpu.CompilerParams(
            dimension_semantics=("parallel", "parallel"),
            vmem_limit_bytes=48 * 1024 * 1024,
        ),
        cost_estimate=pl.CostEstimate(
            flops=B * L,
            transcendentals=0,
            bytes_accessed=(2 * B * L + L) * itemsize,
        ),
    )(x2d, pe2d)

    return out2d.reshape(B, S, D)


# Jitted entry point: x is donated so input_output_aliases={0:0} truly aliases HBM.
positional_encoding_forward_jit = jax.jit(positional_encoding_forward, donate_argnums=(0,))


if __name__ == "__main__":
    # Small shapes consistent with the module's forward: [batch, seq, d_model]
    batch, seq_len, d_model, max_len = 2, 8, 32, 256

    key = jax.random.PRNGKey(0)
    x = jax.random.normal(key, (batch, seq_len, d_model), dtype=jnp.float32)

    pe_table = _build_pe_table(d_model, max_len)
    pe2d = prepare_pe(pe_table, seq_len, x.dtype)   # hoisted, module-init style

    # Reference in plain JAX, computed BEFORE the kernel call (x is donated there).
    ref = x + pe_table[:seq_len][None, :, :]
    ref = jax.block_until_ready(ref)

    out = positional_encoding_forward_jit(x, pe2d)
    out = jax.block_until_ready(out)

    assert out.shape == (batch, seq_len, d_model)
    assert out.dtype == ref.dtype
    assert jnp.allclose(out, ref, atol=1e-6), "mismatch vs reference"

    print("KERNEL_OK")
</pallas_src>

<mosaic_0001>
module attributes {stable_mosaic.version = 11 : i64} {
  func.func @_pe_add_kernel(%arg0: i32, %arg1: i32, %arg2: memref<2x256xf32, #tpu.memory_space<vmem>>, %arg3: memref<1x256xf32, #tpu.memory_space<vmem>>, %arg4: memref<2x256xf32, #tpu.memory_space<vmem>>) attributes {dimension_semantics = [#tpu.dimension_semantics<parallel>, #tpu.dimension_semantics<parallel>], iteration_bounds = array<i64: 1, 1>, scalar_prefetch = 0 : i64, scratch_operands = 0 : i64, tpu.core_type = #tpu.core_type<tc>, window_params = [{transform_indices = @transform_0, window_bounds = array<i64: 2, 256>}, {transform_indices = @transform_1, window_bounds = array<i64: 1, 256>}, {transform_indices = @transform_2, window_bounds = array<i64: 2, 256>}]} {
    %c0 = arith.constant 0 : index
    %c0_0 = arith.constant 0 : index
    %0 = vector.load %arg2[%c0, %c0_0] : memref<2x256xf32, #tpu.memory_space<vmem>>, vector<2x256xf32>
    %c0_1 = arith.constant 0 : index
    %c0_2 = arith.constant 0 : index
    %1 = vector.load %arg3[%c0_1, %c0_2] : memref<1x256xf32, #tpu.memory_space<vmem>>, vector<1x256xf32>
    %2 = vector.broadcast %1 : vector<1x256xf32> to vector<2x256xf32>
    %3 = arith.addf %0, %2 : vector<2x256xf32>
    %c0_3 = arith.constant 0 : index
    %c0_4 = arith.constant 0 : index
    %4 = vector.load %arg4[%c0_3, %c0_4] : memref<2x256xf32, #tpu.memory_space<vmem>>, vector<2x256xf32>
    tpu.vector_store %arg4[%c0_3, %c0_4], %3 {strides = array<i32>} : memref<2x256xf32, #tpu.memory_space<vmem>>, vector<2x256xf32>,
    return
  }
  func.func @transform_0(%arg0: i32, %arg1: i32) -> (i32, i32) {
    %c0_i32 = arith.constant 0 : i32
    return %arg1, %arg0 : i32, i32
  }
  func.func @transform_1(%arg0: i32, %arg1: i32) -> (i32, i32) {
    %c0_i32 = arith.constant 0 : i32
    %c0_i32_0 = arith.constant 0 : i32
    return %c0_i32, %arg0 : i32, i32
  }
  func.func @transform_2(%arg0: i32, %arg1: i32) -> (i32, i32) {
    %c0_i32 = arith.constant 0 : i32
    return %arg1, %arg0 : i32, i32
  }
}

</mosaic_0001>

<llo_original>
// kernel: positional_encoding_forward.1
$region0: #{positional_encoding_forward.1}
  #allocation0 [shape = 'u32[]', space=smem, size = 0x4, offset = 0x4, fixed_abs, tag = 'smem constant byte address 0x4 - core index']
  #allocation1 [shape = 'u32[144,128]{1,0:T(1,128)}', space=vmem, size = 0x12000, scoped, tag = 'internal scratch']
  %s0 = inlined_call_operand.vmem [shape: f32[2,256], index: 0, kind: input, shape index: {}, may-alias: {0,2}]
  %s1 = inlined_call_operand.vmem [shape: f32[1,256], index: 1, kind: input, shape index: {}]
  %s2 = inlined_call_operand.vmem [shape: f32[2,256], index: 2, kind: output, shape index: {}, may-alias: {0,2}]
  %s3 = sld [smem:[#allocation0]]
  $region18: #{positional_encoding_forward.1} parent=0
    _
  %s5 = ssub.s32 1, %s3
  %s6 = scalar_select 0, %s5, %s3
  // Predicated region
  $region2: #{positional_encoding_forward.1} parent=0 // pred_check
    _
  $region3: #{positional_encoding_forward.1} parent=0 // pred_check_branch
    %8 = sbr.rel (0) target = $region5
  $region4: #{positional_encoding_forward.1} parent=0 // pred_region
    _
  $region5: #{positional_encoding_forward.1} parent=0 // pred_fallthru
    _
  // Predicated region
  $region6: #{positional_encoding_forward.1} parent=0 // pred_check
    _
  $region7: #{positional_encoding_forward.1} parent=0 // pred_check_branch
    %10 = sbr.rel (0) target = $region9
  $region8: #{positional_encoding_forward.1} parent=0 // pred_region
    _
  $region9: #{positional_encoding_forward.1} parent=0 // pred_fallthru
    _
  %v11 = vld [vmem:[%s0] sm:$0xf]
  %v12 = vld [vmem:[%s1] sm:$0x3]
  %v14 = vlaneseq
  %v15 = vshrl.u32 %v14, 7
  %v16 = vsub.s32 0, %v15
  %v17 = vrot.slane %v12, %v16
  %v18 = vlaneseq
  %v19 = vshrl.u32 %v18, 7
  %v20 = vsub.s32 1, %v19
  %v21 = vrot.slane %v12, %v20
  %v22 = vcombine.low %v17, %v21
  %v24 = vunpack.c.l.s4 1983009808
  %v25 = vunpack.c.0.s8 %v24
  %v26 = vlaneseq
  %v27 = vshrl.u32 %v26, 7
  %v28 = vsub.s32 %v25, %v27
  %v29 = vrot.slane %v22, %v28
  %v31 = vadd.f32 %v11, %v29
  %32 = vst [vmem:[%s2] sm:$0xf] %v31
  // Predicated region
  $region10: #{positional_encoding_forward.1} parent=0 // pred_check
    _
  $region11: #{positional_encoding_forward.1} parent=0 // pred_check_branch
    %34 = sbr.rel (0) target = $region13
  $region12: #{positional_encoding_forward.1} parent=0 // pred_region
    _
  $region13: #{positional_encoding_forward.1} parent=0 // pred_fallthru
    _
  // Predicated region
  $region14: #{positional_encoding_forward.1} parent=0 // pred_check
    _
  $region15: #{positional_encoding_forward.1} parent=0 // pred_check_branch
    %36 = sbr.rel (0) target = $region17
  $region16: #{positional_encoding_forward.1} parent=0 // pred_region
    _
  $region17: #{positional_encoding_forward.1} parent=0 // pred_fallthru
    _

</llo_original>
